<compile_context>
chip_gen: v6e
topology: v6e:2x2x1
jax: 0.10.0
libtpu: 0.0.40
codegen_flags: <defaults>
</compile_context>

<pallas_src>
import jax
import jax.numpy as jnp
from jax.experimental import pallas as pl
from jax.experimental.pallas import tpu as pltpu

EPS = 1e-5
_VMEM_LIMIT = 32 * 1024 * 1024   # scoped-VMEM budget; safe on v5e/v6e/v7x (64 MiB/TC)
_MATMUL_DTYPE = jnp.float32      # set jnp.bfloat16 on v6e/v7x (looser numerics)


# ---------------------------------------------------------------------------
# pltpu.roll direction probe (resolved once, eagerly, BEFORE any jit tracing).
# ---------------------------------------------------------------------------
_ROLL_NUMPY = None


def _roll_is_numpy():
    """True iff pltpu.roll follows np.roll convention: out[i] = x[i - shift]."""
    global _ROLL_NUMPY
    if _ROLL_NUMPY is None:
        def probe(x_ref, o_ref):
            o_ref[...] = pltpu.roll(x_ref[...], 1, 1)

        x = jax.lax.broadcasted_iota(jnp.float32, (8, 128), 1)
        y = pl.pallas_call(
            probe, out_shape=jax.ShapeDtypeStruct((8, 128), jnp.float32))(x)
        _ROLL_NUMPY = bool(jax.device_get(y[0, 1]) == 0.0)
    return _ROLL_NUMPY


def _shift_lanes(x, off, size):
    """y[:, s] = x[:, (s + off) % size] (circular; callers mask the wrap)."""
    if off % size == 0:
        return x
    shift = ((-off) if _roll_is_numpy() else off) % size
    return pltpu.roll(x, shift, 1)


# ---------------------------------------------------------------------------
# Kernels
# ---------------------------------------------------------------------------
def _make_conv3x3_kernel(H, W, B, prenorm):
    """Raw 3x3 SAME conv on B images in channel-major (Cin, H*W) layout.

    If `prenorm`, the input is first normalized + ReLU'd with per-channel
    scale/shift (the previous stage's BN+ReLU fused in).  Also emits the
    per-step sum / sum-of-squares of the conv output for single-pass BN stats.
    """
    S = H * W

    def kernel(*refs):
        if prenorm:
            x_ref, w_ref, sc_ref, sh_ref, y_ref, st_ref = refs
        else:
            x_ref, w_ref, y_ref, st_ref = refs

        cout = w_ref.shape[1]

        # In-kernel border-validity masks (no HBM mask input).
        lane = jax.lax.broadcasted_iota(jnp.int32, (1, S), 1)
        row = lane // W
        col = lane - row * W
        row_ok = {-1: row >= 1, 1: row <= H - 2}
        col_ok = {-1: col >= 1, 1: col <= W - 2}

        s1 = jnp.zeros((cout, 1), jnp.float32)
        s2 = jnp.zeros((cout, 1), jnp.float32)

        for b in range(B):                              # static unroll, B small
            x_b = x_ref[b]                              # (Cin, S), lane-dense
            if prenorm:
                # fused BatchNorm+ReLU of the previous stage
                x_b = jnp.maximum(x_b * sc_ref[...] + sh_ref[...], 0.0)

            # 9 shifted + masked taps, each consumed immediately by one MXU
            # dot accumulated into a single f32 acc (no im2col concat).
            acc = jnp.zeros((cout, S), jnp.float32)
            for dh in (-1, 0, 1):
                base = _shift_lanes(x_b, dh * W, S)     # XLU lane rotation
                if dh != 0:
                    base = jnp.where(row_ok[dh], base, 0.0)
                for dw in (-1, 0, 1):
                    tap = _shift_lanes(base, dw, S)
                    if dw != 0:
                        tap = jnp.where(col_ok[dw], tap, 0.0)
                    t = (dh + 1) * 3 + (dw + 1)
                    acc = acc + jnp.dot(
                        w_ref[t].astype(_MATMUL_DTYPE),
                        tap.astype(_MATMUL_DTYPE),
                        preferred_element_type=jnp.float32)

            y_ref[b] = acc.astype(y_ref.dtype)          # lane-dense (Cout, S) store
            s1 = s1 + jnp.sum(acc, axis=1, keepdims=True)
            s2 = s2 + jnp.sum(acc * acc, axis=1, keepdims=True)

        # single merged statistics output: (Cout, 2) = [sum, sum_sq]
        st_ref[0] = jnp.concatenate([s1, s2], axis=1)

    return kernel


def _bn_relu_kernel(y_ref, sc_ref, sh_ref, o_ref):
    # y_ref: (rows, S) flat lane-dense block; sc/sh: (rows, 1) scale/shift
    o_ref[...] = jnp.maximum(y_ref[...] * sc_ref[...] + sh_ref[...], 0.0)


# ---------------------------------------------------------------------------
# Wrappers
# ---------------------------------------------------------------------------
def _pack_weight_taps(w_oihw):
    """(Cout, Cin, 3, 3) OIHW -> (9, Cout, Cin), tap t = kh*3 + kw."""
    co, ci = w_oihw.shape[0], w_oihw.shape[1]
    return jnp.transpose(w_oihw, (2, 3, 0, 1)).reshape(9, co, ci)


def _images_per_step(N, Cin, Cout, S):
    """Largest divisor B of N keeping >=2 grid steps (v7x: 2 TCs) and a small
    VMEM footprint.  Multiple images per step amortize per-step overhead."""
    best = 1
    for B in range(1, N + 1):
        if N % B:
            continue
        if N >= 2 and (N // B) < 2:
            continue                      # keep both v7x TensorCores busy
        bytes_est = 2 * 2 * B * (Cin + Cout) * S * 4   # double-buffered in+out
        if bytes_est > _VMEM_LIMIT // 4:
            continue
        best = B
    return best


def _conv3x3_stage(x_ncs, w_taps, scale_prev, shift_prev, H, W):
    """One raw conv stage.  Returns (raw conv output, batch mean, batch var)."""
    N, Cin, S = x_ncs.shape
    Cout = w_taps.shape[1]
    B = _images_per_step(N, Cin, Cout, S)
    steps = N // B
    prenorm = scale_prev is not None
    kernel = _make_conv3x3_kernel(H, W, B, prenorm)

    in_specs = [
        pl.BlockSpec((B, Cin, S), lambda n: (n, 0, 0)),         # B images
        pl.BlockSpec((9, Cout, Cin), lambda n: (0, 0, 0)),      # per-tap weights
    ]
    args = [x_ncs, w_taps]
    if prenorm:
        in_specs += [pl.BlockSpec((Cin, 1), lambda n: (0, 0)),
                     pl.BlockSpec((Cin, 1), lambda n: (0, 0))]
        args += [scale_prev, shift_prev]

    y, st = pl.pallas_call(
        kernel,
        out_shape=(jax.ShapeDtypeStruct((N, Cout, S), jnp.float32),
                   jax.ShapeDtypeStruct((steps, Cout, 2), jnp.float32)),
        grid=(steps,),
        in_specs=in_specs,
        out_specs=(pl.BlockSpec((B, Cout, S), lambda n: (n, 0, 0)),
                   pl.BlockSpec((1, Cout, 2), lambda n: (n, 0, 0))),
        compiler_params=pltpu.CompilerParams(
            dimension_semantics=("parallel",),
            vmem_limit_bytes=_VMEM_LIMIT),
    )(*args)

    # Fold per-step partial sums into global (training-mode) batch statistics.
    # NOTE: single-pass E[x^2]-E[x]^2 in f32; clamped >= 0.  For very large
    # activations a shifted-sum / Welford fold would be more robust.
    count = N * S
    s = jnp.sum(st, axis=0)                 # (Cout, 2)
    mean = s[:, 0] / count
    var = jnp.maximum(s[:, 1] / count - mean * mean, 0.0)
    return y, mean, var


def _fold_bn(mean, var, gamma, beta):
    """BatchNorm as per-channel scale/shift.  The conv bias cancels with the
    batch mean (valid only for training-mode batch statistics)."""
    scale = gamma * jax.lax.rsqrt(var + EPS)
    shift = beta - mean * scale
    return scale.reshape(-1, 1), shift.reshape(-1, 1)


def _bn_relu(y, scale, shift):
    """Finalize BN2+ReLU2 over big flat lane-dense (N*C, S) blocks."""
    N, C, S = y.shape
    rows = N * C
    yf = y.reshape(rows, S)                  # metadata-only reshape
    sc = jnp.tile(scale, (N, 1))             # (rows, 1)
    sh = jnp.tile(shift, (N, 1))
    if rows % 2 == 0 and (rows // 2) % 8 == 0:
        steps, br = 2, rows // 2             # 2 steps -> both v7x TCs get work
    else:
        steps, br = 1, rows

    out = pl.pallas_call(
        _bn_relu_kernel,
        out_shape=jax.ShapeDtypeStruct((rows, S), jnp.float32),
        grid=(steps,),
        in_specs=[pl.BlockSpec((br, S), lambda n: (n, 0)),
                  pl.BlockSpec((br, 1), lambda n: (n, 0)),
                  pl.BlockSpec((br, 1), lambda n: (n, 0))],
        out_specs=pl.BlockSpec((br, S), lambda n: (n, 0)),
        compiler_params=pltpu.CompilerParams(
            dimension_semantics=("parallel",),
            vmem_limit_bytes=_VMEM_LIMIT),
    )(yf, sc, sh)
    return out.reshape(N, C, S)


def conv_block_forward(x_nchw, p):
    """ConvBlock.forward: (Conv3x3 -> BN(train) -> ReLU) x 2, NCHW in / out.

    NOTE: _roll_is_numpy() must be resolved eagerly (outside jit) before this
    function is traced -- done in __main__.
    """
    N, Cin, H, W = x_nchw.shape
    x = x_nchw.reshape(N, Cin, H * W)        # metadata-only reshape (NCHW-major)

    w1 = _pack_weight_taps(p["w1"])
    w2 = _pack_weight_taps(p["w2"])

    # stage 1: raw conv (+ single-pass BN statistics)
    y1, m1, v1 = _conv3x3_stage(x, w1, None, None, H, W)
    sc1, sh1 = _fold_bn(m1, v1, p["g1"], p["beta1"])

    # stage 2: BN1 + ReLU1 fused into conv2's input path (no extra HBM pass)
    y2, m2, v2 = _conv3x3_stage(y1, w2, sc1, sh1, H, W)
    sc2, sh2 = _fold_bn(m2, v2, p["g2"], p["beta2"])

    # finalize: BN2 + ReLU2 (few big flat lane-dense blocks)
    out = _bn_relu(y2, sc2, sh2)
    return out.reshape(N, -1, H, W)

# TODO(synk): for larger Cin (9*Cin >~ 128) build the (9*Cin, S) patch matrix in
# a VMEM scratch and use one matmul per image instead of 9 per-tap dots; for
# larger spatial sizes additionally tile H with a 1-row halo and re-derive the
# VMEM budget per generation (v7x: 64 MiB/TC).  When Cin < 8, stacking images
# along the sublane axis would fill the half-empty vregs in the tap work.


# ---------------- pure-JAX reference (for correctness check) ----------------
def conv_block_reference(x, p):
    def stage(h, w, b, gamma, beta):
        y = jax.lax.conv_general_dilated(
            h, w, window_strides=(1, 1), padding="SAME",
            dimension_numbers=("NCHW", "OIHW", "NCHW"))
        y = y + b.reshape(1, -1, 1, 1)
        mean = jnp.mean(y, axis=(0, 2, 3), keepdims=True)
        var = jnp.mean((y - mean) ** 2, axis=(0, 2, 3), keepdims=True)
        y = (y - mean) * jax.lax.rsqrt(var + EPS)
        y = y * gamma.reshape(1, -1, 1, 1) + beta.reshape(1, -1, 1, 1)
        return jnp.maximum(y, 0.0)

    h = stage(x, p["w1"], p["b1"], p["g1"], p["beta1"])
    h = stage(h, p["w2"], p["b2"], p["g2"], p["beta2"])
    return h


# ----------------------------- parameter init -------------------------------
def init_params(key, ch_in, ch_out):
    """PyTorch-default-style init; weights stored OIHW like nn.Conv2d."""
    k1, k2, k3, k4 = jax.random.split(key, 4)
    bound1 = 1.0 / jnp.sqrt(ch_in * 9.0)
    bound2 = 1.0 / jnp.sqrt(ch_out * 9.0)
    return {
        "w1": jax.random.uniform(k1, (ch_out, ch_in, 3, 3), jnp.float32,
                                 -bound1, bound1),
        "b1": jax.random.uniform(k2, (ch_out,), jnp.float32, -bound1, bound1),
        "g1": jnp.ones((ch_out,), jnp.float32),
        "beta1": jnp.zeros((ch_out,), jnp.float32),
        "w2": jax.random.uniform(k3, (ch_out, ch_out, 3, 3), jnp.float32,
                                 -bound2, bound2),
        "b2": jax.random.uniform(k4, (ch_out,), jnp.float32, -bound2, bound2),
        "g2": jnp.ones((ch_out,), jnp.float32),
        "beta2": jnp.zeros((ch_out,), jnp.float32),
    }


if __name__ == "__main__":
    _roll_is_numpy()  # resolve the pltpu.roll convention before any jit trace

    key = jax.random.PRNGKey(0)
    kx, kp = jax.random.split(key)

    N, C_IN, C_OUT, H, W = 2, 4, 8, 16, 16
    x = jax.random.normal(kx, (N, C_IN, H, W), jnp.float32)   # NCHW, like PyTorch
    params = init_params(kp, C_IN, C_OUT)

    out = jax.block_until_ready(jax.jit(conv_block_forward)(x, params))
    ref = jax.block_until_ready(conv_block_reference(x, params))

    assert out.shape == (N, C_OUT, H, W)
    max_err = float(jnp.max(jnp.abs(out - ref)))
    assert jnp.allclose(out, ref, rtol=1e-4, atol=5e-4), max_err

    print("KERNEL_OK")
</pallas_src>

<mosaic_0001>
module attributes {stable_mosaic.version = 11 : i64} {
  func.func @probe(%arg0: memref<8x128xf32, #tpu.memory_space<vmem>>, %arg1: memref<8x128xf32, #tpu.memory_space<vmem>>) attributes {dimension_semantics = [], scalar_prefetch = 0 : i64, scratch_operands = 0 : i64, tpu.core_type = #tpu.core_type<tc>} {
    %c0 = arith.constant 0 : index
    %c0_0 = arith.constant 0 : index
    %0 = vector.load %arg0[%c0, %c0_0] : memref<8x128xf32, #tpu.memory_space<vmem>>, vector<8x128xf32>
    %c1_i32 = arith.constant 1 : i32
    %1 = tpu.dynamic_rotate %0 by %c1_i32 dim 1 : vector<8x128xf32>, i32 -> vector<8x128xf32>
    %c0_1 = arith.constant 0 : index
    %c0_2 = arith.constant 0 : index
    %2 = vector.load %arg1[%c0_1, %c0_2] : memref<8x128xf32, #tpu.memory_space<vmem>>, vector<8x128xf32>
    tpu.vector_store %arg1[%c0_1, %c0_2], %1 {strides = array<i32>} : memref<8x128xf32, #tpu.memory_space<vmem>>, vector<8x128xf32>,
    return
  }
}

</mosaic_0001>

<llo_original>
// kernel: tpu_custom_call.1
$region0: #{tpu_custom_call.1}
  #allocation0 [shape = 'u32[]', space=smem, size = 0x4, offset = 0x4, fixed_abs, tag = 'smem constant byte address 0x4 - core index']
  #allocation1 [shape = 'u32[144,128]{1,0:T(1,128)}', space=vmem, size = 0x12000, scoped, tag = 'internal scratch']
  %s0 = inlined_call_operand.hbm [shape: f32[8,128], index: 0, kind: input, shape index: {}]
  %s1 = inlined_call_operand.hbm [shape: f32[8,128], index: 1, kind: output, shape index: {}]
  %s2 = sld [smem:[#allocation0]]
  $region18: #{tpu_custom_call.1} parent=0
    _
  %s4 = ssub.s32 1, %s2
  %s5 = scalar_select 0, %s4, %s2
  $region1: #{tpu_custom_call.1} parent=0
    #allocation2 [shape = 'u8[4096]{0}', space=vmem, size = 0x1000, scoped, tag = 'input window, operand 0, single buffered']
    #allocation3 [shape = 's32[1]{0}', space=sflag, size = 0x4, scoped, tag = 'scoped memory for tpu_custom_call.1']
    #allocation4 [shape = 's32[1]{0}', space=sflag, size = 0x4, scoped, tag = 'scoped memory for tpu_custom_call.1']
    #allocation5 [shape = 'u8[4096]{0}', space=vmem, size = 0x1000, scoped, tag = 'output window, operand 0, single buffered']
    %6 = vsyncpa [#allocation3], 0
    %7 = vsyncpa [#allocation4], 0
    // Predicated region
    $region2: #{tpu_custom_call.1} parent=1 // pred_check
      _
    $region3: #{tpu_custom_call.1} parent=1 // pred_check_branch
      %9 = sbr.rel (0) target = $region5
    $region4: #{tpu_custom_call.1} parent=1 // pred_region
      %s11 = ssub.s32 128, 128
      %12 = vsyncadd [#allocation3], %s11
      %s14 = sshll.u32 [#allocation2], 4
      %s15 = int_to_ptr.vmem [resolvable:$true] %s14
      %17 = dma.hbm_to_vmem [thread:$0]  %s0, 128, %s15, [#allocation3]
    $region5: #{tpu_custom_call.1} parent=1 // pred_fallthru
      _
    // Predicated region
    $region6: #{tpu_custom_call.1} parent=1 // pred_check
      _
    $region7: #{tpu_custom_call.1} parent=1 // pred_check_branch
      %19 = sbr.rel (0) target = $region9
    $region8: #{tpu_custom_call.1} parent=1 // pred_region
      %20 = dma.done [#allocation3], 128
    $region9: #{tpu_custom_call.1} parent=1 // pred_fallthru
      _
    %v21 = vld [vmem:[#allocation2] sm:$0xff]
    %22 = vrot.lane.b32.xlu0 %v21, 1
    %v23 = vpop.permute.xlu0 %22
    %24 = vst [vmem:[#allocation5] sm:$0xff] %v23
    // Predicated region
    $region10: #{tpu_custom_call.1} parent=1 // pred_check
      _
    $region11: #{tpu_custom_call.1} parent=1 // pred_check_branch
      %26 = sbr.rel (0) target = $region13
    $region12: #{tpu_custom_call.1} parent=1 // pred_region
      %s28 = ssub.s32 128, 128
      %29 = vsyncadd [#allocation4], %s28
      %s31 = sshll.u32 [#allocation5], 4
      %s32 = int_to_ptr.vmem [resolvable:$true] %s31
      %34 = dma.vmem_to_hbm [thread:$0]  %s32, 128, %s1, [#allocation4]
    $region13: #{tpu_custom_call.1} parent=1 // pred_fallthru
      _
    // Predicated region
    $region14: #{tpu_custom_call.1} parent=1 // pred_check
      _
    $region15: #{tpu_custom_call.1} parent=1 // pred_check_branch
      %36 = sbr.rel (0) target = $region17
    $region16: #{tpu_custom_call.1} parent=1 // pred_region
      %37 = dma.done [#allocation4], 128
    $region17: #{tpu_custom_call.1} parent=1 // pred_fallthru
      _
    %38 = vsyncpa [#allocation3], 1
    %39 = vsyncpa [#allocation4], 1

</llo_original>
